<compile_context>
chip_gen: v7x
topology: tpu7x:2x2x1
jax: 0.10.0
libtpu: 0.0.40
codegen_flags: <defaults>
</compile_context>

<pallas_src>
import functools

import jax
import jax.numpy as jnp
from jax.experimental import pallas as pl
from jax.experimental.pallas import tpu as pltpu


def _round_up(x, m):
    return (x + m - 1) // m * m


def _temporal_block_kernel(xa_ref, xb_ref, wcomb_ref, bcomb_ref, w2_ref, b2_ref,
                           out_ref, *, K, dilation, pad, pad_al, x_halo, TL,
                           c_out_p):
    """One (batch, L-tile) grid step.  bf16 matmul inputs, f32 accumulation.

    xa_ref   : (1, C_in_p, TL)        bf16  padded-x cols [l*TL, l*TL+TL)
    xb_ref   : (1, C_in_p, x_halo)    bf16  padded-x cols [(l+1)*TL, (l+1)*TL+x_halo)
               together (contiguous): original cols [l*TL - x_halo, l*TL + TL)
    wcomb_ref: (2*C_out_p, K*C_in_p)  bf16  [conv1 taps ; residual 1x1 in last tap slot]
    bcomb_ref: (2*C_out_p, 1)         f32   [b1 ; b_down]
    w2_ref   : (C_out_p, K*C_out_p)   bf16  conv2 taps flattened along contraction
    b2_ref   : (C_out_p, 1)           f32
    out_ref  : (1, C_out_p, TL)             lane-dense output block
    """
    l = pl.program_id(1)

    # Contiguous x window for this tile; both pieces are 128-lane aligned.
    xfull = jnp.concatenate([xa_ref[0], xb_ref[0]], axis=1)   # (C_in_p, TL+x_halo)

    W1 = pad_al + TL                 # extended conv1 output width (lane-aligned res)
    base1 = x_halo - pad_al - pad

    # ---- conv1 + residual, fused into ONE matmul over the im2col slab ----
    slab1 = jnp.concatenate(
        [xfull[:, base1 + k * dilation: base1 + k * dilation + W1]
         for k in range(K)], axis=0)
    comb = jnp.dot(wcomb_ref[...], slab1,
                   preferred_element_type=jnp.float32) + bcomb_ref[...]

    h1 = jnp.maximum(comb[:c_out_p, :], 0.0)     # conv1 -> chomp -> ReLU (dropout=id)
    res = comb[c_out_p:, pad_al:]                # residual branch, lane-aligned slice

    # Causal left-zero-padding of conv2's input (only bites on the first L tile),
    # realised as a broadcast (1, W1) lane mask — no big int32 temporary.
    col = jax.lax.broadcasted_iota(jnp.int32, (1, W1), 1)
    h1p = jnp.where(col >= pad_al - l * TL, h1, 0.0).astype(jnp.bfloat16)

    # ---- conv2: one matmul over an im2col slab built from the value ----
    # (v7x note: if VMEM is tight, replace this concat with K accumulating dots.)
    base2 = pad_al - pad
    slab2 = jnp.concatenate(
        [h1p[:, base2 + k * dilation: base2 + k * dilation + TL]
         for k in range(K)], axis=0)
    h2 = jnp.maximum(
        jnp.dot(w2_ref[...], slab2, preferred_element_type=jnp.float32)
        + b2_ref[...], 0.0)                      # conv2 -> chomp -> ReLU (dropout=id)

    # ---- residual add + final ReLU ----
    out_ref[0] = jnp.maximum(res + h2, 0.0).astype(out_ref.dtype)


# ---------------- parameter packing (runs ONCE per parameter set) ----------------

def pack_temporal_block_params(w1, b1, w2, b2, wd, bd):
    """Pack conv weights into the MXU-friendly layout the kernel expects."""
    C_out, C_in, K = w1.shape
    C_in_p = _round_up(C_in, 16)
    C_out_p = _round_up(C_out, 16)

    # conv1 -> (C_out_p, K*C_in_p), tap-major along the contraction.
    w1_p = jnp.pad(w1, ((0, C_out_p - C_out), (0, C_in_p - C_in), (0, 0)))
    w1_flat = jnp.transpose(w1_p, (0, 2, 1)).reshape(C_out_p, K * C_in_p)

    # residual 1x1 (identity when n_input == n_output), folded into the last
    # (unshifted) tap block of the combined weight.
    if wd is None:
        assert C_in == C_out, "identity residual requires n_input == n_output"
        wd_m = jnp.eye(C_out, dtype=jnp.float32)
        bd_v = jnp.zeros((C_out,), jnp.float32)
    else:
        wd_m = wd.reshape(C_out, C_in)
        bd_v = bd
    wd_p = jnp.pad(wd_m, ((0, C_out_p - C_out), (0, C_in_p - C_in)))
    w_res = jnp.concatenate(
        [jnp.zeros((C_out_p, (K - 1) * C_in_p), jnp.float32), wd_p], axis=1)
    wcomb = jnp.concatenate([w1_flat, w_res], axis=0).astype(jnp.bfloat16)

    bcomb = jnp.concatenate(
        [jnp.pad(b1, (0, C_out_p - C_out)),
         jnp.pad(bd_v, (0, C_out_p - C_out))]).reshape(2 * C_out_p, 1
                                                       ).astype(jnp.float32)

    # conv2 -> (C_out_p, K*C_out_p)
    w2_p = jnp.pad(w2, ((0, C_out_p - C_out), (0, C_out_p - C_out), (0, 0)))
    w2_flat = jnp.transpose(w2_p, (0, 2, 1)).reshape(
        C_out_p, K * C_out_p).astype(jnp.bfloat16)
    b2_p = jnp.pad(b2, (0, C_out_p - C_out)).reshape(C_out_p, 1).astype(jnp.float32)

    return wcomb, bcomb, w2_flat, b2_p


# ---------------- forward ----------------

def temporal_block_forward(x, wcomb, bcomb, w2_flat, b2c, *, n_output,
                           kernel_size, dilation, padding, l_block=1024,
                           out_dtype=jnp.bfloat16):
    """x: (B, C_in, L) float32 (NCL). Returns (B, n_output, L) in out_dtype."""
    B, C_in, L = x.shape
    K = kernel_size
    C_out = n_output
    pad = padding
    assert pad == (K - 1) * dilation and pad >= 1, "causal TCN config expected"

    C_in_p = _round_up(C_in, 16)
    C_out_p = _round_up(C_out, 16)
    assert wcomb.shape == (2 * C_out_p, K * C_in_p)
    assert w2_flat.shape == (C_out_p, K * C_out_p)

    # ---- L tiling with a left halo (all quantities 128-lane aligned) ----
    pad_al = _round_up(pad, 128)               # lane-aligned residual offset
    x_halo = _round_up(pad_al + pad, 128)      # extra x columns left of each tile
    TL = _round_up(min(l_block, _round_up(L, 128)), x_halo)
    Lp = _round_up(L, TL)
    NL = Lp // TL
    R = TL // x_halo                           # x_halo-sized blocks per TL tile

    # bf16-cast first (halves the pad round-trip), left-pad by x_halo zeros,
    # right-pad length to Lp, pad channels for bf16 sublane packing.
    x_p = jnp.pad(x.astype(jnp.bfloat16),
                  ((0, 0), (0, C_in_p - C_in), (x_halo, Lp - L)))

    kernel = functools.partial(
        _temporal_block_kernel, K=K, dilation=dilation, pad=pad, pad_al=pad_al,
        x_halo=x_halo, TL=TL, c_out_p=C_out_p)

    # Explicit scoped-VMEM budget: double-buffered blocks + matmul temporaries.
    W1 = pad_al + TL
    out_bytes = jnp.dtype(out_dtype).itemsize
    est = (2 * C_in_p * (TL + x_halo) * 2            # x blocks (double-buffered)
           + 2 * (2 * C_out_p) * (K * C_in_p) * 2    # wcomb
           + 2 * C_out_p * (K * C_out_p) * 2         # w2
           + 2 * C_out_p * TL * out_bytes            # out block
           + C_in_p * (TL + x_halo) * 2              # xfull
           + K * C_in_p * W1 * 2                     # slab1
           + 2 * C_out_p * W1 * 4                    # comb (f32)
           + C_out_p * W1 * (4 + 2)                  # h1 (f32) + h1p (bf16)
           + K * C_out_p * TL * 2                    # slab2
           + 3 * C_out_p * TL * 4)                   # h2 / res / out f32 temps
    vmem_limit = int(min(max(est * 3 // 2, 32 * 1024 * 1024), 64 * 1024 * 1024))

    out_p = pl.pallas_call(
        kernel,
        out_shape=jax.ShapeDtypeStruct((B, C_out_p, Lp), out_dtype),
        grid=(B, NL),
        in_specs=[
            pl.BlockSpec((1, C_in_p, TL), lambda b, l: (b, 0, l)),
            pl.BlockSpec((1, C_in_p, x_halo), lambda b, l: (b, 0, (l + 1) * R)),
            pl.BlockSpec((2 * C_out_p, K * C_in_p), lambda b, l: (0, 0)),
            pl.BlockSpec((2 * C_out_p, 1), lambda b, l: (0, 0)),
            pl.BlockSpec((C_out_p, K * C_out_p), lambda b, l: (0, 0)),
            pl.BlockSpec((C_out_p, 1), lambda b, l: (0, 0)),
        ],
        out_specs=pl.BlockSpec((1, C_out_p, TL), lambda b, l: (b, 0, l)),
        compiler_params=pltpu.CompilerParams(
            dimension_semantics=("parallel", "parallel"),
            vmem_limit_bytes=vmem_limit),
    )(x_p, x_p, wcomb, bcomb, w2_flat, b2c)

    return out_p[:, :C_out, :L]


# ---------------- parameter setup (glue, plain JAX) ----------------

def _weight_norm(v, g):
    """PyTorch nn.utils.weight_norm default: norm over all dims except dim 0."""
    norm = jnp.sqrt(jnp.sum(v * v, axis=tuple(range(1, v.ndim)), keepdims=True))
    return g.reshape((-1,) + (1,) * (v.ndim - 1)) * v / norm


def make_params(key, n_input, n_output, kernel_size):
    ks = jax.random.split(key, 8)
    s = 0.2
    v1 = s * jax.random.normal(ks[0], (n_output, n_input, kernel_size), jnp.float32)
    g1 = 1.0 + 0.1 * jax.random.normal(ks[1], (n_output,), jnp.float32)
    b1 = s * jax.random.normal(ks[2], (n_output,), jnp.float32)
    v2 = s * jax.random.normal(ks[3], (n_output, n_output, kernel_size), jnp.float32)
    g2 = 1.0 + 0.1 * jax.random.normal(ks[4], (n_output,), jnp.float32)
    b2 = s * jax.random.normal(ks[5], (n_output,), jnp.float32)
    wd = s * jax.random.normal(ks[6], (n_output, n_input, 1), jnp.float32)
    bd = s * jax.random.normal(ks[7], (n_output,), jnp.float32)
    w1 = _weight_norm(v1, g1)
    w2 = _weight_norm(v2, g2)
    return w1, b1, w2, b2, wd, bd


# ---------------- pure-JAX reference (mirrors the PyTorch graph) ----------------

def ref_forward(x, w1, b1, w2, b2, wd, bd, *, kernel_size, dilation, padding):
    def conv1d(inp, w, b, dil, pad):
        y = jax.lax.conv_general_dilated(
            inp, w, window_strides=(1,), padding=[(pad, pad)],
            rhs_dilation=(dil,), dimension_numbers=('NCH', 'OIH', 'NCH'))
        return y + b[None, :, None]

    h = conv1d(x, w1, b1, dilation, padding)
    h = h[:, :, :-padding]                      # Chomp1d
    h = jnp.maximum(h, 0.0)                     # ReLU (dropout = identity, eval)
    h = conv1d(h, w2, b2, dilation, padding)
    h = h[:, :, :-padding]
    h = jnp.maximum(h, 0.0)
    res = conv1d(x, wd, bd, 1, 0)               # 1x1 downsample
    return jnp.maximum(res + h, 0.0)


if __name__ == "__main__":
    B, C_in, C_out, L = 2, 4, 8, 16
    kernel_size, dilation = 3, 2
    padding = (kernel_size - 1) * dilation      # causal TCN padding

    key = jax.random.PRNGKey(0)
    kx, kp = jax.random.split(key)
    x = jax.random.normal(kx, (B, C_in, L), jnp.float32)
    w1, b1, w2, b2, wd, bd = make_params(kp, C_in, C_out, kernel_size)

    # Pack weights ONCE per parameter set (hoisted out of the forward path).
    packed = pack_temporal_block_params(w1, b1, w2, b2, wd, bd)

    ref = ref_forward(x, w1, b1, w2, b2, wd, bd,
                      kernel_size=kernel_size, dilation=dilation,
                      padding=padding)

    # f32-output path (for an apples-to-apples check against the f32 reference).
    fwd_f32 = jax.jit(functools.partial(
        temporal_block_forward, n_output=C_out, kernel_size=kernel_size,
        dilation=dilation, padding=padding, out_dtype=jnp.float32))
    out = jax.block_until_ready(fwd_f32(x, *packed))
    assert out.shape == (B, C_out, L)
    # bf16 matmul inputs (f32 accumulation) vs an all-f32 reference -> loose tolerance.
    assert jnp.allclose(out, ref, atol=5e-2, rtol=5e-2), "mismatch vs reference (f32 out)"

    # Default bf16-output path (halved HBM writeback), checked with looser tolerance.
    out_bf16 = jax.block_until_ready(temporal_block_forward(
        x, *packed, n_output=C_out, kernel_size=kernel_size,
        dilation=dilation, padding=padding))
    assert out_bf16.shape == (B, C_out, L) and out_bf16.dtype == jnp.bfloat16
    assert jnp.allclose(out_bf16.astype(jnp.float32), ref, atol=1e-1, rtol=1e-1), \
        "mismatch vs reference (bf16 out)"

    print("KERNEL_OK")
</pallas_src>

<mosaic_0001>
module attributes {stable_mosaic.version = 11 : i64} {
  func.func @_temporal_block_kernel(%arg0: i32, %arg1: i32, %arg2: memref<1x16x256xbf16, #tpu.memory_space<vmem>>, %arg3: memref<1x16x256xbf16, #tpu.memory_space<vmem>>, %arg4: memref<32x48xbf16, #tpu.memory_space<vmem>>, %arg5: memref<32x1xf32, #tpu.memory_space<vmem>>, %arg6: memref<16x48xbf16, #tpu.memory_space<vmem>>, %arg7: memref<16x1xf32, #tpu.memory_space<vmem>>, %arg8: memref<1x16x256xf32, #tpu.memory_space<vmem>>) attributes {dimension_semantics = [#tpu.dimension_semantics<parallel>, #tpu.dimension_semantics<parallel>], iteration_bounds = array<i64: 2, 1>, scalar_prefetch = 0 : i64, scratch_operands = 0 : i64, tpu.core_type = #tpu.core_type<tc>, window_params = [{transform_indices = @transform_0, window_bounds = array<i64: 1, 16, 256>}, {transform_indices = @transform_1, window_bounds = array<i64: 1, 16, 256>}, {pipeline_mode = #tpu.pipeline_mode<synchronous>, transform_indices = @transform_2, window_bounds = array<i64: 32, 48>}, {pipeline_mode = #tpu.pipeline_mode<synchronous>, transform_indices = @transform_3, window_bounds = array<i64: 32, 1>}, {pipeline_mode = #tpu.pipeline_mode<synchronous>, transform_indices = @transform_4, window_bounds = array<i64: 16, 48>}, {pipeline_mode = #tpu.pipeline_mode<synchronous>, transform_indices = @transform_5, window_bounds = array<i64: 16, 1>}, {transform_indices = @transform_6, window_bounds = array<i64: 1, 16, 256>}]} {
    %c0 = arith.constant 0 : index
    %c0_0 = arith.constant 0 : index
    %c0_1 = arith.constant 0 : index
    %0 = vector.load %arg2[%c0, %c0_0, %c0_1] : memref<1x16x256xbf16, #tpu.memory_space<vmem>>, vector<1x16x256xbf16>
    %1 = vector.shape_cast %0 : vector<1x16x256xbf16> to vector<16x256xbf16>
    %c0_2 = arith.constant 0 : index
    %c0_3 = arith.constant 0 : index
    %c0_4 = arith.constant 0 : index
    %2 = vector.load %arg3[%c0_2, %c0_3, %c0_4] : memref<1x16x256xbf16, #tpu.memory_space<vmem>>, vector<1x16x256xbf16>
    %3 = vector.shape_cast %2 : vector<1x16x256xbf16> to vector<16x256xbf16>
    %4 = tpu.concatenate %1, %3 in 1 : vector<16x256xbf16>, vector<16x256xbf16> -> vector<16x512xbf16>
    %5 = vector.extract_strided_slice %4 {offsets = [0, 124], sizes = [16, 384], strides = [1, 1]} : vector<16x512xbf16> to vector<16x384xbf16>
    %6 = vector.extract_strided_slice %4 {offsets = [0, 126], sizes = [16, 384], strides = [1, 1]} : vector<16x512xbf16> to vector<16x384xbf16>
    %7 = vector.extract_strided_slice %4 {offsets = [0, 128], sizes = [16, 384], strides = [1, 1]} : vector<16x512xbf16> to vector<16x384xbf16>
    %8 = tpu.concatenate %5, %6, %7 in 0 : vector<16x384xbf16>, vector<16x384xbf16>, vector<16x384xbf16> -> vector<48x384xbf16>
    %c0_5 = arith.constant 0 : index
    %c0_6 = arith.constant 0 : index
    %9 = vector.load %arg4[%c0_5, %c0_6] : memref<32x48xbf16, #tpu.memory_space<vmem>>, vector<32x48xbf16>
    %cst = arith.constant dense<0.000000e+00> : vector<32x384xf32>
    %10 = tpu.matmul %9, %8, %cst {dimension_numbers = #tpu.dot_dimension_numbers<[1], [0], [0], [1], [0, 0, 1, 1], [], []>} : vector<32x48xbf16>, vector<48x384xbf16>, vector<32x384xf32> -> vector<32x384xf32>
    %c0_7 = arith.constant 0 : index
    %c0_8 = arith.constant 0 : index
    %11 = vector.load %arg5[%c0_7, %c0_8] : memref<32x1xf32, #tpu.memory_space<vmem>>, vector<32x1xf32>
    %12 = vector.broadcast %11 : vector<32x1xf32> to vector<32x384xf32>
    %13 = arith.addf %10, %12 : vector<32x384xf32>
    %14 = vector.extract_strided_slice %13 {offsets = [0, 0], sizes = [16, 384], strides = [1, 1]} : vector<32x384xf32> to vector<16x384xf32>
    %cst_9 = arith.constant 0.000000e+00 : f32
    %15 = vector.broadcast %cst_9 : f32 to vector<16x384xf32>
    %16 = arith.maximumf %14, %15 : vector<16x384xf32>
    %17 = vector.extract_strided_slice %13 {offsets = [16, 128], sizes = [16, 256], strides = [1, 1]} : vector<32x384xf32> to vector<16x256xf32>
    %18 = tpu.iota {dimensions = array<i32: 1>} : vector<1x384xi32>
    %c256_i32 = arith.constant 256 : i32
    %19 = arith.muli %arg1, %c256_i32 : i32
    %c128_i32 = arith.constant 128 : i32
    %20 = arith.subi %c128_i32, %19 : i32
    %21 = vector.broadcast %20 : i32 to vector<1x384xi32>
    %22 = arith.cmpi sge, %18, %21 : vector<1x384xi32>
    %cst_10 = arith.constant 0.000000e+00 : f32
    %23 = vector.shape_cast %22 : vector<1x384xi1> to vector<1x384xi1>
    %24 = vector.broadcast %23 : vector<1x384xi1> to vector<16x384xi1>
    %25 = vector.broadcast %cst_10 : f32 to vector<16x384xf32>
    %26 = arith.select %24, %16, %25 : vector<16x384xi1>, vector<16x384xf32>
    %27 = arith.truncf %26 : vector<16x384xf32> to vector<16x384xbf16>
    %28 = vector.extract_strided_slice %27 {offsets = [0, 124], sizes = [16, 256], strides = [1, 1]} : vector<16x384xbf16> to vector<16x256xbf16>
    %29 = vector.extract_strided_slice %27 {offsets = [0, 126], sizes = [16, 256], strides = [1, 1]} : vector<16x384xbf16> to vector<16x256xbf16>
    %30 = vector.extract_strided_slice %27 {offsets = [0, 128], sizes = [16, 256], strides = [1, 1]} : vector<16x384xbf16> to vector<16x256xbf16>
    %31 = tpu.concatenate %28, %29, %30 in 0 : vector<16x256xbf16>, vector<16x256xbf16>, vector<16x256xbf16> -> vector<48x256xbf16>
    %c0_11 = arith.constant 0 : index
    %c0_12 = arith.constant 0 : index
    %32 = vector.load %arg6[%c0_11, %c0_12] : memref<16x48xbf16, #tpu.memory_space<vmem>>, vector<16x48xbf16>
    %cst_13 = arith.constant dense<0.000000e+00> : vector<16x256xf32>
    %33 = tpu.matmul %32, %31, %cst_13 {dimension_numbers = #tpu.dot_dimension_numbers<[1], [0], [0], [1], [0, 0, 1, 1], [], []>} : vector<16x48xbf16>, vector<48x256xbf16>, vector<16x256xf32> -> vector<16x256xf32>
    %c0_14 = arith.constant 0 : index
    %c0_15 = arith.constant 0 : index
    %34 = vector.load %arg7[%c0_14, %c0_15] : memref<16x1xf32, #tpu.memory_space<vmem>>, vector<16x1xf32>
    %35 = vector.broadcast %34 : vector<16x1xf32> to vector<16x256xf32>
    %36 = arith.addf %33, %35 : vector<16x256xf32>
    %cst_16 = arith.constant 0.000000e+00 : f32
    %37 = vector.broadcast %cst_16 : f32 to vector<16x256xf32>
    %38 = arith.maximumf %36, %37 : vector<16x256xf32>
    %39 = arith.addf %17, %38 : vector<16x256xf32>
    %cst_17 = arith.constant 0.000000e+00 : f32
    %40 = vector.broadcast %cst_17 : f32 to vector<16x256xf32>
    %41 = arith.maximumf %39, %40 : vector<16x256xf32>
    %c0_18 = arith.constant 0 : index
    %c0_19 = arith.constant 0 : index
    %c0_20 = arith.constant 0 : index
    %42 = vector.load %arg8[%c0_18, %c0_19, %c0_20] : memref<1x16x256xf32, #tpu.memory_space<vmem>>, vector<1x16x256xf32>
    %43 = vector.shape_cast %42 : vector<1x16x256xf32> to vector<16x256xf32>
    %44 = vector.shape_cast %41 : vector<16x256xf32> to vector<1x16x256xf32>
    tpu.vector_store %arg8[%c0_18, %c0_19, %c0_20], %44 {strides = array<i32>} : memref<1x16x256xf32, #tpu.memory_space<vmem>>, vector<1x16x256xf32>,
    return
  }
  func.func @transform_0(%arg0: i32, %arg1: i32) -> (i32, i32, i32) {
    %c0_i32 = arith.constant 0 : i32
    %c0_i32_0 = arith.constant 0 : i32
    return %arg0, %c0_i32, %arg1 : i32, i32, i32
  }
  func.func @transform_1(%arg0: i32, %arg1: i32) -> (i32, i32, i32) {
    %c1_i32 = arith.constant 1 : i32
    %0 = arith.addi %arg1, %c1_i32 : i32
    %c1_i32_0 = arith.constant 1 : i32
    %1 = arith.muli %0, %c1_i32_0 : i32
    %c0_i32 = arith.constant 0 : i32
    %c0_i32_1 = arith.constant 0 : i32
    return %arg0, %c0_i32, %1 : i32, i32, i32
  }
  func.func @transform_2(%arg0: i32, %arg1: i32) -> (i32, i32) {
    %c0_i32 = arith.constant 0 : i32
    %c0_i32_0 = arith.constant 0 : i32
    %c0_i32_1 = arith.constant 0 : i32
    return %c0_i32, %c0_i32_0 : i32, i32
  }
  func.func @transform_3(%arg0: i32, %arg1: i32) -> (i32, i32) {
    %c0_i32 = arith.constant 0 : i32
    %c0_i32_0 = arith.constant 0 : i32
    %c0_i32_1 = arith.constant 0 : i32
    return %c0_i32, %c0_i32_0 : i32, i32
  }
  func.func @transform_4(%arg0: i32, %arg1: i32) -> (i32, i32) {
    %c0_i32 = arith.constant 0 : i32
    %c0_i32_0 = arith.constant 0 : i32
    %c0_i32_1 = arith.constant 0 : i32
    return %c0_i32, %c0_i32_0 : i32, i32
  }
  func.func @transform_5(%arg0: i32, %arg1: i32) -> (i32, i32) {
    %c0_i32 = arith.constant 0 : i32
    %c0_i32_0 = arith.constant 0 : i32
    %c0_i32_1 = arith.constant 0 : i32
    return %c0_i32, %c0_i32_0 : i32, i32
  }
  func.func @transform_6(%arg0: i32, %arg1: i32) -> (i32, i32, i32) {
    %c0_i32 = arith.constant 0 : i32
    %c0_i32_0 = arith.constant 0 : i32
    return %arg0, %c0_i32, %arg1 : i32, i32, i32
  }
}

</mosaic_0001>

<llo_original>
// kernel: temporal_block_forward.1
$region0: #{temporal_block_forward.1}
  #allocation0 [shape = 'u32[]', space=smem, size = 0x4, offset = 0x4, fixed_abs, tag = 'smem constant byte address 0x4 - core index']
  #allocation1 [shape = 'u32[144,128]{1,0:T(1,128)}', space=vmem, size = 0x12000, scoped, tag = 'internal scratch']
  %s0 = inlined_call_operand.vmem [shape: bf16[2,16,512], index: 0, kind: input, shape index: {}, may-alias: {0,1}]
  %s1 = inlined_call_operand.vmem [shape: bf16[2,16,512], index: 1, kind: input, shape index: {}, may-alias: {0,1}]
  %s2 = inlined_call_operand.vmem [shape: bf16[32,48], index: 2, kind: input, shape index: {}]
  %s3 = inlined_call_operand.vmem [shape: f32[32,1], index: 3, kind: input, shape index: {}]
  %s4 = inlined_call_operand.vmem [shape: bf16[16,48], index: 4, kind: input, shape index: {}]
  %s5 = inlined_call_operand.vmem [shape: f32[16,1], index: 5, kind: input, shape index: {}]
  %s6 = inlined_call_operand.vmem [shape: f32[2,16,256], index: 6, kind: output, shape index: {}]
  %s7 = sld [smem:[#allocation0]]
  $region133: #{temporal_block_forward.1} parent=0
    _
  %s9 = ssub.s32 1, %s7
  %s10 = scalar_select 0, %s9, %s7
  $region1: #{temporal_block_forward.1} parent=0
    #allocation2 [shape = 'u8[16384]{0}', space=vmem, size = 0x4000, scoped, tag = 'input window, operand 0']
    #allocation3 [shape = 'u8[16384]{0}', space=vmem, size = 0x4000, scoped, tag = 'input window, operand 1']
    loop: start=0, step=1, limit=4
    $region2: #{temporal_block_forward.1} parent=1 // loop_pre_header
      _
    $region3: #{temporal_block_forward.1} parent=1 // loop_header
      %s12 = sphi 0, %s16
      %p13 = scmp.ge.s32.totalorder %s12, 4
      %s19 = sphi 0, %s31
      %s20 = sphi 0, %s27
      %s21 = sphi 0, %s19
      %s22 = sphi 0, %s20
      %s23 = sphi 0, %s21
      %s24 = sphi 0, %s22
      %s36 = sphi 0, %s38
      %s39 = sphi 0, %s36
      %s40 = sphi 0, %s39
      %s56 = sphi 0, %s40
      %s66 = sphi 0, %s68
      %s69 = sphi 0, %s66
      %s70 = sphi 0, %s69
      %s86 = sphi 0, %s70
      %s90 = sphi 0, %s90
      %s92 = sphi 0, %s90
      %s93 = sphi 0, %s92
      %s107 = sphi 0, %s93
      %s111 = sphi 0, %s111
      %s113 = sphi 0, %s111
      %s114 = sphi 0, %s113
      %s128 = sphi 0, %s114
      %s132 = sphi 0, %s132
      %s134 = sphi 0, %s132
      %s135 = sphi 0, %s134
      %s149 = sphi 0, %s135
      %s153 = sphi 0, %s153
      %s155 = sphi 0, %s153
      %s156 = sphi 0, %s155
      %s170 = sphi 0, %s156
      %s178 = sphi 0, %s180
      %s181 = sphi 0, %s178
      %s182 = sphi 0, %s181
      %s198 = sphi 0, %s182
    $region4: #{temporal_block_forward.1} parent=1 // loop_header_branch
      %15 = sbr.rel (%p13) target = $region8
    $region5: #{temporal_block_forward.1} parent=1 // loop_body
      %s17 = ssub.s32 %s12, 1
      %s18 = ssub.s32 %s12, 2
      %s25 = sadd.s32 1, %s20
      %p26 = scmp.ge.s32.totalorder %s25, 1
      %s27 = scalar_select %p26, 0, %s25
      %s28 = sadd.s32 1, %s19
      %s29 = scalar_select %p26, %s28, %s19
      %p30 = scmp.ge.s32.totalorder %s29, 2
      %s31 = scalar_select %p30, 0, %s29
      %s32 = ssub.s32 %s19, %s31
      %s33 = ssub.s32 %s20, %s27
      %s34 = sor.u32 %s32, %s33
      %p35 = scmp.eq.s32.totalorder %s34, 0
      %s37 = sadd.s32 %s36, 1
      %s38 = scalar_select %p35, %s36, %s37
      %p41 = pneg %p35
      %p42 = scmp.eq.s32.totalorder %s12, 1
      %p43 = por %p41, %p42
      %p44 = scmp.ne.s32.totalorder %s36, %s39
      %p45 = scmp.eq.s32.totalorder %s12, 0
      %p46 = por %p44, %p45
      %p47 = scmp.ne.s32.totalorder %s36, %s39
      %p48 = scmp.eq.s32.totalorder %s17, 1
      %p49 = por %p47, %p48
      %p50 = scmp.ne.s32.totalorder %s39, %s40
      %p51 = scmp.eq.s32.totalorder %s17, 0
      %p52 = por %p50, %p51
      %p53 = scmp.ne.s32.totalorder %s39, %s40
      %p54 = scmp.eq.s32.totalorder %s18, 1
      %p55 = por %p53, %p54
      %p57 = scmp.ne.s32.totalorder %s40, %s56
      %p58 = scmp.eq.s32.totalorder %s18, 0
      %p59 = por %p57, %p58
      %s60 = sadd.s32 %s20, 1
      %s61 = sadd.s32 %s27, 1
      %s62 = ssub.s32 %s19, %s31
      %s63 = ssub.s32 %s60, %s61
      %s64 = sor.u32 %s62, %s63
      %p65 = scmp.eq.s32.totalorder %s64, 0
      %s67 = sadd.s32 %s66, 1
      %s68 = scalar_select %p65, %s66, %s67
      %p71 = pneg %p65
      %p72 = scmp.eq.s32.totalorder %s12, 1
      %p73 = por %p71, %p72
      %p74 = scmp.ne.s32.totalorder %s66, %s69
      %p75 = scmp.eq.s32.totalorder %s12, 0
      %p76 = por %p74, %p75
      %p77 = scmp.ne.s32.totalorder %s66, %s69
      %p78 = scmp.eq.s32.totalorder %s17, 1
      %p79 = por %p77, %p78
      %p80 = scmp.ne.s32.totalorder %s69, %s70
      %p81 = scmp.eq.s32.totalorder %s17, 0
      %p82 = por %p80, %p81
      %p83 = scmp.ne.s32.totalorder %s69, %s70
      %p84 = scmp.eq.s32.totalorder %s18, 1
      %p85 = por %p83, %p84
      %p87 = scmp.ne.s32.totalorder %s70, %s86
      %p88 = scmp.eq.s32.totalorder %s18, 0
      %p89 = por %p87, %p88
      %s91 = sadd.s32 %s90, 1
      %p94 = scmp.eq.s32.totalorder %s12, 1
      %p95 = scmp.ne.s32.totalorder %s90, %s92
      %p96 = scmp.eq.s32.totalorder %s12, 0
      %p97 = por %p95, %p96
      %p98 = scmp.ne.s32.totalorder %s90, %s92
      %p99 = scmp.eq.s32.totalorder %s17, 1
      %p100 = por %p98, %p99
      %p101 = scmp.ne.s32.totalorder %s92, %s93
      %p102 = scmp.eq.s32.totalorder %s17, 0
      %p103 = por %p101, %p102
      %p104 = scmp.ne.s32.totalorder %s92, %s93
      %p105 = scmp.eq.s32.totalorder %s18, 1
      %p106 = por %p104, %p105
      %p108 = scmp.ne.s32.totalorder %s93, %s107
      %p109 = scmp.eq.s32.totalorder %s18, 0
      %p110 = por %p108, %p109
      %s112 = sadd.s32 %s111, 1
      %p115 = scmp.eq.s32.totalorder %s12, 1
      %p116 = scmp.ne.s32.totalorder %s111, %s113
      %p117 = scmp.eq.s32.totalorder %s12, 0
      %p118 = por %p116, %p117
      %p119 = scmp.ne.s32.totalorder %s111, %s113
      %p120 = scmp.eq.s32.totalorder %s17, 1
      %p121 = por %p119, %p120
      %p122 = scmp.ne.s32.totalorder %s113, %s114
      %p123 = scmp.eq.s32.totalorder %s17, 0
      %p124 = por %p122, %p123
      %p125 = scmp.ne.s32.totalorder %s113, %s114
      %p126 = scmp.eq.s32.totalorder %s18, 1
      %p127 = por %p125, %p126
      %p129 = scmp.ne.s32.totalorder %s114, %s128
      %p130 = scmp.eq.s32.totalorder %s18, 0
      %p131 = por %p129, %p130
      %s133 = sadd.s32 %s132, 1
      %p136 = scmp.eq.s32.totalorder %s12, 1
      %p137 = scmp.ne.s32.totalorder %s132, %s134
      %p138 = scmp.eq.s32.totalorder %s12, 0
      %p139 = por %p137, %p138
      %p140 = scmp.ne.s32.totalorder %s132, %s134
      %p141 = scmp.eq.s32.totalorder %s17, 1
      %p142 = por %p140, %p141
      %p143 = scmp.ne.s32.totalorder %s134, %s135
      %p144 = scmp.eq.s32.totalorder %s17, 0
      %p145 = por %p143, %p144
      %p146 = scmp.ne.s32.totalorder %s134, %s135
      %p147 = scmp.eq.s32.totalorder %s18, 1
      %p148 = por %p146, %p147
      %p150 = scmp.ne.s32.totalorder %s135, %s149
      %p151 = scmp.eq.s32.totalorder %s18, 0
      %p152 = por %p150, %p151
      %s154 = sadd.s32 %s153, 1
      %p157 = scmp.eq.s32.totalorder %s12, 1
      %p158 = scmp.ne.s32.totalorder %s153, %s155
      %p159 = scmp.eq.s32.totalorder %s12, 0
      %p160 = por %p158, %p159
      %p161 = scmp.ne.s32.totalorder %s153, %s155
      %p162 = scmp.eq.s32.totalorder %s17, 1
      %p163 = por %p161, %p162
      %p164 = scmp.ne.s32.totalorder %s155, %s156
      %p165 = scmp.eq.s32.totalorder %s17, 0
      %p166 = por %p164, %p165
      %p167 = scmp.ne.s32.totalorder %s155, %s156
      %p168 = scmp.eq.s32.totalorder %s18, 1
      %p169 = por %p167, %p168
      %p171 = scmp.ne.s32.totalorder %s156, %s170
      %p172 = scmp.eq.s32.totalorder %s18, 0
      %p173 = por %p171, %p172
      %s174 = ssub.s32 %s19, %s31
      %s175 = ssub.s32 %s20, %s27
      %s176 = sor.u32 %s174, %s175
      %p177 = scmp.eq.s32.totalorder %s176, 0
      %s179 = sadd.s32 %s178, 1
      %s180 = scalar_select %p177, %s178, %s179
      %p183 = pneg %p177
      %p184 = scmp.eq.s32.totalorder %s12, 1
      %p185 = por %p183, %p184
      %p186 = scmp.ne.s32.totalorder %s178, %s181
      %p187 = scmp.eq.s32.totalorder %s12, 0
      %p188 = por %p186, %p187
      %p189 = scmp.ne.s32.totalorder %s178, %s181
      %p190 = scmp.eq.s32.totalorder %s17, 1
      %p191 = por %p189, %p190
      %p192 = scmp.ne.s32.totalorder %s181, %s182
      %p193 = scmp.eq.s32.totalorder %s17, 0
      %p194 = por %p192, %p193
      %p195 = scmp.ne.s32.totalorder %s181, %s182
      %p196 = scmp.eq.s32.totalorder %s18, 1
      %p197 = por %p195, %p196
      %p199 = scmp.ne.s32.totalorder %s182, %s198
      %p200 = scmp.eq.s32.totalorder %s18, 0
      %p201 = por %p199, %p200
      %p202 = scmp.le.s32.totalorder 1, %s12
      %p203 = scmp.lt.s32.totalorder %s12, 3
      %p204 = pnand %p202, %p203
      %p205 = pneg %p204
      // Predicated region
      $region9: #{temporal_block_forward.1} parent=5 // pred_check
        _
      $region10: #{temporal_block_forward.1} parent=5 // pred_check_branch
        %207 = sbr.rel (%p204) target = $region12
      $region11: #{temporal_block_forward.1} parent=5 // pred_region
        %s208 = ssub.s32 %s12, 1
        // Predicated region
        $region13: #{temporal_block_forward.1} parent=11 // pred_check
          %p209 = pneg %p103
        $region14: #{temporal_block_forward.1} parent=11 // pred_check_branch
          %211 = sbr.rel (%p209) target = $region16
        $region15: #{temporal_block_forward.1} parent=11 // pred_region
          _
        $region16: #{temporal_block_forward.1} parent=11 // pred_fallthru
          _
        // Predicated region
        $region17: #{temporal_block_forward.1} parent=11 // pred_check
          %p212 = pneg %p124
        $region18: #{temporal_block_forward.1} parent=11 // pred_check_branch
          %214 = sbr.rel (%p212) target = $region20
        $region19: #{temporal_block_forward.1} parent=11 // pred_region
          _
        $region20: #{temporal_block_forward.1} parent=11 // pred_fallthru
          _
        // Predicated region
        $region21: #{temporal_block_forward.1} parent=11 // pred_check
          %p215 = pneg %p145
        $region22: #{temporal_block_forward.1} parent=11 // pred_check_branch
          %217 = sbr.rel (%p215) target = $region24
        $region23: #{temporal_block_forward.1} parent=11 // pred_region
          _
        $region24: #{temporal_block_forward.1} parent=11 // pred_fallthru
          _
        // Predicated region
        $region25: #{temporal_block_forward.1} parent=11 // pred_check
          %p218 = pneg %p166
        $region26: #{temporal_block_forward.1} parent=11 // pred_check_branch
          %220 = sbr.rel (%p218) target = $region28
        $region27: #{temporal_block_forward.1} parent=11 // pred_region
          _
        $region28: #{temporal_block_forward.1} parent=11 // pred_fallthru
          _
      $region12: #{temporal_block_forward.1} parent=5 // pred_fallthru
        _
      %p221 = scmp.lt.s32.totalorder %s12, 2
      // Predicated region
      $region29: #{temporal_block_forward.1} parent=5 // pred_check
        %p222 = pneg %p221
      $region30: #{temporal_block_forward.1} parent=5 // pred_check_branch
        %224 = sbr.rel (%p222) target = $region32
      $region31: #{temporal_block_forward.1} parent=5 // pred_region
        // Predicated region
        $region33: #{temporal_block_forward.1} parent=31 // pred_check
          %p225 = pneg %p46
        $region34: #{temporal_block_forward.1} parent=31 // pred_check_branch
          %227 = sbr.rel (%p225) target = $region36
        $region35: #{temporal_block_forward.1} parent=31 // pred_region
          %s228 = sand.u32 %s36, 1
          %s229 = sand.u32 %s36, 1
          %s230 = smul.addr %s229, 16
          %s231 = scalar_lea.vmem [#allocation2], %s230
          %s232 = smul.u32 2, %s20
          %s233 = smul.addr %s19, 8
          %s234 = sadd.s32 %s232, %s233
          %s235 = smul.addr %s234, 4
          %s236 = scalar_lea.vmem %s0, %s235
          // Predicated region
          $region37: #{temporal_block_forward.1} parent=35 // pred_check
            _
          $region38: #{temporal_block_forward.1} parent=35 // pred_check_branch
            %238 = sbr.rel (0) target = $region40
          $region39: #{temporal_block_forward.1} parent=35 // pred_region
            // Predicated region
            $region41: #{temporal_block_forward.1} parent=39 // pred_check
              _
            $region42: #{temporal_block_forward.1} parent=39 // pred_check_branch
              %240 = sbr.rel (0) target = $region44
            $region43: #{temporal_block_forward.1} parent=39 // pred_region
              // Predicated region
              $region56: #{temporal_block_forward.1} parent=43 // pred_check
                _
              $region57: #{temporal_block_forward.1} parent=43 // pred_check_branch
                %257 = sbr.rel (0) target = $region59
              $region58: #{temporal_block_forward.1} parent=43 // pred_region
                loop: start=0, step=1, limit=1
                $region60: #{temporal_block_forward.1} parent=58 // loop_pre_header
                  _
                $region61: #{temporal_block_forward.1} parent=58 // loop_header
                  %s259 = sphi 0, %s263
                  %p260 = scmp.ge.s32.totalorder %s259, 1
                  %s264 = sphi %s236, %s236
                  %s265 = sphi %s231, %s231
                $region62: #{temporal_block_forward.1} parent=58 // loop_header_branch
                  %262 = sbr.rel (%p260) target = $region66
                $region63: #{temporal_block_forward.1} parent=58 // loop_body
                  %v266 = vld [vmem:[%s264] sm:$0xff]
                  %267 = vst [vmem:[%s265] sm:$0xff] %v266
                  %v268 = vld [vmem:[%s264 + $0x10] sm:$0xff]
                  %269 = vst [vmem:[%s265 + $0x8] sm:$0xff] %v268
                $region64: #{temporal_block_forward.1} parent=58 // loop_footer
                  %s263 = sadd.s32 1, %s259
                $region65: #{temporal_block_forward.1} parent=58 // loop_footer_branch
                  %258 = sbr.rel target = $region61
                $region66: #{temporal_block_forward.1} parent=58 // loop_exit
                  _
              $region59: #{temporal_block_forward.1} parent=43 // pred_fallthru
                _
              // Predicated region
              $region67: #{temporal_block_forward.1} parent=43 // pred_check
                _
              $region68: #{temporal_block_forward.1} parent=43 // pred_check_branch
                %271 = sbr.rel target = $region70
              $region69: #{temporal_block_forward.1} parent=43 // pred_region
                _
              $region70: #{temporal_block_forward.1} parent=43 // pred_fallthru
                _
            $region44: #{temporal_block_forward.1} parent=39 // pred_fallthru
              _
            // Predicated region
            $region45: #{temporal_block_forward.1} parent=39 // pred_check
              _
            $region46: #{temporal_block_forward.1} parent=39 // pred_check_branch
              %242 = sbr.rel target = $region48
            $region47: #{temporal_block_forward.1} parent=39 // pred_region
              loop: start=0, step=1, limit=1
              $region49: #{temporal_block_forward.1} parent=47 // loop_pre_header
                _
              $region50: #{temporal_block_forward.1} parent=47 // loop_header
                %s245 = sphi 0, %s249
                %p246 = scmp.ge.s32.totalorder %s245, 1
                %s250 = sphi %s236, %s236
                %s251 = sphi %s231, %s231
              $region51: #{temporal_block_forward.1} parent=47 // loop_header_branch
                %248 = sbr.rel (%p246) target = $region55
              $region52: #{temporal_block_forward.1} parent=47 // loop_body
                %v252 = vld [vmem:[%s250] sm:$0xff]
                %253 = vst [vmem:[%s251] sm:$0xff] %v252
                %v254 = vld [vmem:[%s250 + $0x10] sm:$0xff]
                %255 = vst [vmem:[%s251 + $0x8] sm:$0xff] %v254
              $region53: #{temporal_block_forward.1} parent=47 // loop_footer
                %s249 = sadd.s32 1, %s245
              $region54: #{temporal_block_forward.1} parent=47 // loop_footer_branch
                %244 = sbr.rel target = $region50
              $region55: #{temporal_block_forward.1} parent=47 // loop_exit
                _
            $region48: #{temporal_block_forward.1} parent=39 // pred_fallthru
              _
          $region40: #{temporal_block_forward.1} parent=35 // pred_fallthru
            _
          %272 = vnop
        $region36: #{temporal_block_forward.1} parent=31 // pred_fallthru
          _
        // Predicated region
        $region71: #{temporal_block_forward.1} parent=31 // pred_check
          %p273 = pneg %p76
        $region72: #{temporal_block_forward.1} parent=31 // pred_check_branch
          %275 = sbr.rel (%p273) target = $region74
        $region73: #{temporal_block_forward.1} parent=31 // pred_region
          %s276 = sand.u32 %s66, 1
          %s277 = sand.u32 %s66, 1
          %s278 = smul.addr %s277, 16
          %s279 = scalar_lea.vmem [#allocation3], %s278
          %s280 = sadd.s32 %s20, 1
          %s281 = smul.u32 2, %s280
          %s282 = smul.addr %s19, 8
          %s283 = sadd.s32 %s281, %s282
          %s284 = smul.addr %s283, 4
          %s285 = scalar_lea.vmem %s1, %s284
          // Predicated region
          $region75: #{temporal_block_forward.1} parent=73 // pred_check
            _
          $region76: #{temporal_block_forward.1} parent=73 // pred_check_branch
            %287 = sbr.rel (0) target = $region78
          $region77: #{temporal_block_forward.1} parent=73 // pred_region
            // Predicated region
            $region79: #{temporal_block_forward.1} parent=77 // pred_check
              _
            $region80: #{temporal_block_forward.1} parent=77 // pred_check_branch
              %289 = sbr.rel (0) target = $region82
            $region81: #{temporal_block_forward.1} parent=77 // pred_region
              // Predicated region
              $region94: #{temporal_block_forward.1} parent=81 // pred_check
                _
              $region95: #{temporal_block_forward.1} parent=81 // pred_check_branch
                %306 = sbr.rel (0) target = $region97
              $region96: #{temporal_block_forward.1} parent=81 // pred_region
                loop: start=0, step=1, limit=1
                $region98: #{temporal_block_forward.1} parent=96 // loop_pre_header
                  _
                $region99: #{temporal_block_forward.1} parent=96 // loop_header
                  %s308 = sphi 0, %s312
                  %p309 = scmp.ge.s32.totalorder %s308, 1
                  %s313 = sphi %s285, %s285
                  %s314 = sphi %s279, %s279
                $region100: #{temporal_block_forward.1} parent=96 // loop_header_branch
                  %311 = sbr.rel (%p309) target = $region104
                $region101: #{temporal_block_forward.1} parent=96 // loop_body
                  %v315 = vld [vmem:[%s313] sm:$0xff]
                  %316 = vst [vmem:[%s314] sm:$0xff] %v315
                  %v317 = vld [vmem:[%s313 + $0x10] sm:$0xff]
                  %318 = vst [vmem:[%s314 + $0x8] sm:$0xff] %v317
                $region102: #{temporal_block_forward.1} parent=96 // loop_footer
                  %s312 = sadd.s32 1, %s308
                $region103: #{temporal_block_forward.1} parent=96 // loop_footer_branch
                  %307 = sbr.rel target = $region99
                $region104: #{temporal_block_forward.1} parent=96 // loop_exit
                  _
              $region97: #{temporal_block_forward.1} parent=81 // pred_fallthru
                _
              // Predicated region
              $region105: #{temporal_block_forward.1} parent=81 // pred_check
                _
              $region106: #{temporal_block_forward.1} parent=81 // pred_check_branch
                %320 = sbr.rel target = $region108
              $region107: #{temporal_block_forward.1} parent=81 // pred_region
                _
              $region108: #{temporal_block_forward.1} parent=81 // pred_fallthru
                _
            $region82: #{temporal_block_forward.1} parent=77 // pred_fallthru
              _
            // Predicated region
            $region83: #{temporal_block_forward.1} parent=77 // pred_check
              _
            $region84: #{temporal_block_forward.1} parent=77 // pred_check_branch
              %291 = sbr.rel target = $region86
            $region85: #{temporal_block_forward.1} parent=77 // pred_region
              loop: start=0, step=1, limit=1
              $region87: #{temporal_block_forward.1} parent=85 // loop_pre_header
                _
              $region88: #{temporal_block_forward.1} parent=85 // loop_header
                %s294 = sphi 0, %s298
                %p295 = scmp.ge.s32.totalorder %s294, 1
                %s299 = sphi %s285, %s285
                %s300 = sphi %s279, %s279
              $region89: #{temporal_block_forward.1} parent=85 // loop_header_branch
                %297 = sbr.rel (%p295) target = $region93
              $region90: #{temporal_block_forward.1} parent=85 // loop_body
                %v301 = vld [vmem:[%s299] sm:$0xff]
                %302 = vst [vmem:[%s300] sm:$0xff] %v301
                %v303 = vld [vmem:[%s299 + $0x10] sm:$0xff]
                %304 = vst [vmem:[%s300 + $0x8] sm:$0xff] %v303
              $region91: #{temporal_block_forward.1} parent=85 // loop_footer
                %s298 = sadd.s32 1, %s294
              $region92: #{temporal_block_forward.1} parent=85 // loop_footer_branch
                %293 = sbr.rel target = $region88
              $region93: #{temporal_block_forward.1} parent=85 // loop_exit
                _
            $region86: #{temporal_block_forward.1} parent=77 // pred_fallthru
              _
          $region78: #{temporal_block_forward.1} parent=73 // pred_fallthru
            _
          %321 = vnop
        $region74: #{temporal_block_forward.1} parent=31 // pred_fallthru
          _
      $region32: #{temporal_block_forward.1} parent=5 // pred_fallthru
        _
      %p322 = scmp.le.s32.totalorder 1, %s12
      %p323 = scmp.lt.s32.totalorder %s12, 3
      %p324 = pnand %p322, %p323
      %p325 = pneg %p324
      // Predicated region
      $region109: #{temporal_block_forward.1} parent=5 // pred_check
        _
      $region110: #{temporal_block_forward.1} parent=5 // pred_check_branch
        %327 = sbr.rel (%p324) target = $region112
      $region111: #{temporal_block_forward.1} parent=5 // pred_region
        %s328 = ssub.s32 %s12, 1
        %s329 = sand.u32 %s39, 1
        %s330 = sand.u32 %s39, 1
        %s331 = smul.addr %s330, 16
        %s332 = scalar_lea.vmem [#allocation2], %s331
        // Predicated region
        $region113: #{temporal_block_forward.1} parent=111 // pred_check
          %p333 = pneg %p52
        $region114: #{temporal_block_forward.1} parent=111 // pred_check_branch
          %335 = sbr.rel (%p333) target = $region116
        $region115: #{temporal_block_forward.1} parent=111 // pred_region
          _
        $region116: #{temporal_block_forward.1} parent=111 // pred_fallthru
          _
        %s336 = sand.u32 %s69, 1
        %s337 = sand.u32 %s69, 1
        %s338 = smul.addr %s337, 16
        %s339 = scalar_lea.vmem [#allocation3], %s338
        // Predicated region
        $region117: #{temporal_block_forward.1} parent=111 // pred_check
          %p340 = pneg %p82
        $region118: #{temporal_block_forward.1} parent=111 // pred_check_branch
          %342 = sbr.rel (%p340) target = $region120
        $region119: #{temporal_block_forward.1} parent=111 // pred_region
          _
        $region120: #{temporal_block_forward.1} parent=111 // pred_fallthru
          _
        %s343 = sand.u32 %s39, 1
        %s344 = sand.u32 %s39, 1
        %s345 = smul.addr %s344, 16
        %s346 = scalar_lea.vmem [#allocation2], %s345
        %p347 = pneg %p52
        %p348 = pneg %p49
        %s349 = sand.u32 %s69, 1
        %s350 = sand.u32 %s69, 1
        %s351 = smul.addr %s350, 16
        %s352 = scalar_lea.vmem [#allocation3], %s351
        %p353 = pneg %p82
        %p354 = pneg %p79
        %p355 = pneg %p103
        %p356 = pneg %p100
        %p357 = pneg %p124
        %p358 = pneg %p121
        %p359 = pneg %p145
        %p360 = pneg %p142
        %p361 = pneg %p166
        %p362 = pneg %p163
        %p363 = pneg %p194
        %p364 = pneg %p191
        %s365 = smul.u32 2, %s22
        %p366 = scmp.lt.s32.totalorder %s21, 1
        %s367 = scalar_select %p366, %s21, 1
        %p368 = scmp.lt.s32.totalorder %s365, 1
        %s369 = scalar_select %p368, %s365, 1
        %s370 = smul.addr %s367, 4
        %s371 = sadd.s32 %s369, %s370
        %s372 = smul.addr %s371, 8
        %s373 = scalar_lea.vmem %s6, %s372
        %s374 = smul.u32 2, %s22
        %s375 = sadd.s32 %s22, 1
        %s376 = smul.u32 2, %s375
        %s377 = smul.u32 2, %s22
        %p378 = scmp.lt.s32.totalorder %s21, 1
        %s379 = scalar_select %p378, %s21, 1
        %p380 = scmp.lt.s32.totalorder %s377, 1
        %s381 = scalar_select %p380, %s377, 1
        %s382 = smul.addr %s379, 4
        %s383 = sadd.s32 %s381, %s382
        %s384 = smul.addr %s383, 8
        %s385 = scalar_lea.vmem %s6, %s384
        %s386 = smul.u32 2, %s22
        %v388 = vld [vmem:[%s332] sm:$0xff]
        %v389 = vld [vmem:[%s332 + $0x8] sm:$0xff]
        %v390 = vld [vmem:[%s339] sm:$0xff]
        %v391 = vld [vmem:[%s339 + $0x8] sm:$0xff]
        %v394 = vunpack.c.l.b16 %v388
        %v395 = vunpack.c.h.b16 %v388
        %v396 = vunpack.c.l.b16 %v389
        %v397 = vunpack.c.h.b16 %v389
        %v398 = vpack.c.b16 %v396, %v394
        %v399 = vpack.c.b16 %v397, %v395
        %v402 = vunpack.c.l.b16 %v390
        %v403 = vunpack.c.h.b16 %v390
        %v404 = vunpack.c.l.b16 %v391
        %v405 = vunpack.c.h.b16 %v391
        %v406 = vpack.c.b16 %v404, %v402
        %v407 = vpack.c.b16 %v405, %v403
        %408 = vrot.lane.b32.xlu0 %v398, 126
        %v409 = vpop.permute.xlu0 %408
        %410 = vrot.lane.b32.xlu0 %v399, 126
        %v411 = vpop.permute.xlu0 %410
        %412 = vrot.lane.b32.xlu0 %v406, 126
        %v413 = vpop.permute.xlu0 %412
        %414 = vrot.lane.b32.xlu0 %v407, 126
        %v415 = vpop.permute.xlu0 %414
        %vm416 = vcmask 1031168
        %v417 = vsel %vm416, %v409, %v411
        %v418 = vsel %vm416, %v411, %v413
        %v419 = vsel %vm416, %v413, %v415
        %420 = vrot.lane.b32.xlu0 %v399, 124
        %v421 = vpop.permute.xlu0 %420
        %422 = vrot.lane.b32.xlu0 %v406, 124
        %v423 = vpop.permute.xlu0 %422
        %424 = vrot.lane.b32.xlu0 %v407, 124
        %v425 = vpop.permute.xlu0 %424
        %vm426 = vcmask 1014784
        %v427 = vsel %vm426, %v421, %v423
        %v428 = vsel %vm426, %v423, %v425
        %v429 = vld [vmem:[%s2] sm:$0xf]
        %v430 = vld [vmem:[%s2 + $0x4] sm:$0xf]
        %v431 = vld [vmem:[%s2 + $0x8] sm:$0xf]
        %v432 = vld [vmem:[%s2 + $0xc] sm:$0xf]
        %v433 = vld [vmem:[%s3] sm:$0xff]
        %v434 = vld [vmem:[%s3 + $0x8] sm:$0xff]
        %v435 = vld [vmem:[%s3 + $0x10] sm:$0xff]
        %v436 = vld [vmem:[%s3 + $0x18] sm:$0xff]
        %438 = vset.pattern.permute.xlu0 0
        %439 = vperm.xlu0 %438, %v433
        %v440 = vpop.permute.xlu0 %439
        %443 = vset.pattern.permute.xlu0 0
        %444 = vperm.xlu0 %443, %v434
        %v445 = vpop.permute.xlu0 %444
        %448 = vset.pattern.permute.xlu0 0
        %449 = vperm.xlu0 %448, %v435
        %v450 = vpop.permute.xlu0 %449
        %453 = vset.pattern.permute.xlu0 0
        %454 = vperm.xlu0 %453, %v436
        %v455 = vpop.permute.xlu0 %454
        %v461 = vunpack.c.l.b16 %v429
        %v462 = vunpack.c.l.b16 %v430
        %v463 = vunpack.c.l.b16 %v431
        %v464 = vunpack.c.l.b16 %v432
        %v465 = vpack.c.b16 %v462, %v461
        %v466 = vpack.c.b16 %v464, %v463
        %467 = vrot.lane.b32.xlu0 %v398, 4
        %v468 = vpop.permute.xlu0 %467
        %469 = vrot.lane.b32.xlu0 %v399, 4
        %v470 = vpop.permute.xlu0 %469
        %471 = vrot.lane.b32.xlu0 %v406, 4
        %v472 = vpop.permute.xlu0 %471
        %473 = vrot.lane.b32.xlu0 %v407, 4
        %v474 = vpop.permute.xlu0 %473
        %475 = vrot.lane.b32.xlu0 %v417, 4
        %v476 = vpop.permute.xlu0 %475
        %477 = vrot.lane.b32.xlu0 %v418, 4
        %v478 = vpop.permute.xlu0 %477
        %479 = vrot.lane.b32.xlu0 %v419, 4
        %v480 = vpop.permute.xlu0 %479
        %481 = vrot.lane.b32.xlu0 %v415, 4
        %v482 = vpop.permute.xlu0 %481
        %483 = vrot.lane.b32.xlu0 %v421, 4
        %v484 = vpop.permute.xlu0 %483
        %485 = vrot.lane.b32.xlu0 %v427, 4
        %v486 = vpop.permute.xlu0 %485
        %487 = vrot.lane.b32.xlu0 %v428, 4
        %v488 = vpop.permute.xlu0 %487
        %489 = vrot.lane.b32.xlu0 %v425, 4
        %v490 = vpop.permute.xlu0 %489
        %vm491 = vcmask 31744
        %v492 = vsel %vm491, %v468, %v470
        %v493 = vsel %vm491, %v470, %v472
        %v494 = vsel %vm491, %v472, %v474
        %v495 = vsel %vm491, %v476, %v478
        %v496 = vsel %vm491, %v478, %v480
        %v497 = vsel %vm491, %v480, %v482
        %v498 = vsel %vm491, %v484, %v486
        %v499 = vsel %vm491, %v486, %v488
        %v500 = vsel %vm491, %v488, %v490
        %vm510 = vcmask 392192
        %v512 = vsel %vm510, %v465, 0
        %v515 = vsel %vm510, %v466, 0
        %517 = vmatprep.subr.bf16.mxu0 %v493
        %518 = vmatpush1.bf16.msra.mxu0 %v492
        %519 = vmatprep.subr.bf16.mxu0 %v496
        %520 = vmatpush1.bf16.msra.mxu0 %v495
        %521 = vmatprep.subr.bf16.mxu0 %v499
        %522 = vmatpush1.bf16.msra.mxu0 %v498
        %523 = vmatprep.subr.bf16.mxu0 0
        %524 = vmatpush1.bf16.msra.mxu0 0
        %525 = vmatprep.subr.bf16.mxu0 0
        %526 = vmatpush1.bf16.msra.mxu0 0
        %527 = vmatprep.subr.bf16.mxu0 0
        %528 = vmatpush1.bf16.msra.mxu0 0
        %529 = vmatprep.subr.bf16.mxu0 0
        %530 = vmatpush1.bf16.msra.mxu0 0
        %531 = vmatprep.subr.bf16.mxu0 0
        %532 = vmatpush1.bf16.msra.mxu0 0
        %533 = vmatprep.subr.bf16.mxu0 0
        %534 = vmatpush1.bf16.msra.mxu0 0
        %535 = vmatprep.subr.bf16.mxu0 0
        %536 = vmatpush1.bf16.msra.mxu0 0
        %537 = vmatprep.subr.bf16.mxu0 0
        %538 = vmatpush1.bf16.msra.mxu0 0
        %539 = vmatprep.subr.bf16.mxu0 0
        %540 = vmatpush1.bf16.msra.mxu0 0
        %541 = vmatprep.subr.bf16.mxu0 0
        %542 = vmatpush1.bf16.msra.mxu0 0
        %543 = vmatprep.subr.bf16.mxu0 0
        %544 = vmatpush1.bf16.msra.mxu0 0
        %545 = vmatprep.subr.bf16.mxu0 0
        %546 = vmatpush1.bf16.msra.mxu0 0
        %547 = vmatprep.subr.bf16.mxu0 0
        %548 = vmatpush1.bf16.msra.mxu0 0
        %549 = vmatprep.mubr.bf16.mxu0 0
        %550 = vmatmul.mubr.bf16.gmra.mrb[0].mxu0 %v512
        %v551 = vpop.f32.mrb[0].mxu0
        %v552 = vadd.f32 %v440, %v551
        %v553 = vpop.f32.mrb[0].mxu0
        %v554 = vadd.f32 %v440, %v553
        %v555 = vpop.f32.mrb[0].mxu0
        %v556 = vadd.f32 %v445, %v555
        %v557 = vpop.f32.mrb[0].mxu0
        %v558 = vadd.f32 %v445, %v557
        %559 = vmatprep.mubr.bf16.mxu0 0
        %560 = vmatmul.mubr.bf16.gmra.mrb[0].mxu0 %v515
        %v561 = vpop.f32.mrb[0].mxu0
        %v562 = vpop.f32.mrb[0].mxu0
        %v563 = vadd.f32 %v450, %v562
        %v564 = vpop.f32.mrb[0].mxu0
        %v565 = vpop.f32.mrb[0].mxu0
        %v566 = vadd.f32 %v455, %v565
        %567 = vdwg.mxu0
        %568 = vmatprep.subr.bf16.mxu0 0
        %569 = vmatpush1.bf16.msra.mxu0 %v494
        %570 = vmatprep.subr.bf16.mxu0 0
        %571 = vmatpush1.bf16.msra.mxu0 %v497
        %572 = vmatprep.subr.bf16.mxu0 0
        %573 = vmatpush1.bf16.msra.mxu0 %v500
        %574 = vmatprep.subr.bf16.mxu0 0
        %575 = vmatpush1.bf16.msra.mxu0 0
        %576 = vmatprep.subr.bf16.mxu0 0
        %577 = vmatpush1.bf16.msra.mxu0 0
        %578 = vmatprep.subr.bf16.mxu0 0
        %579 = vmatpush1.bf16.msra.mxu0 0
        %580 = vmatprep.subr.bf16.mxu0 0
        %581 = vmatpush1.bf16.msra.mxu0 0
        %582 = vmatprep.subr.bf16.mxu0 0
        %583 = vmatpush1.bf16.msra.mxu0 0
        %584 = vmatprep.subr.bf16.mxu0 0
        %585 = vmatpush1.bf16.msra.mxu0 0
        %586 = vmatprep.subr.bf16.mxu0 0
        %587 = vmatpush1.bf16.msra.mxu0 0
        %588 = vmatprep.subr.bf16.mxu0 0
        %589 = vmatpush1.bf16.msra.mxu0 0
        %590 = vmatprep.subr.bf16.mxu0 0
        %591 = vmatpush1.bf16.msra.mxu0 0
        %592 = vmatprep.subr.bf16.mxu0 0
        %593 = vmatpush1.bf16.msra.mxu0 0
        %594 = vmatprep.subr.bf16.mxu0 0
        %595 = vmatpush1.bf16.msra.mxu0 0
        %596 = vmatprep.subr.bf16.mxu0 0
        %597 = vmatpush1.bf16.msra.mxu0 0
        %598 = vmatprep.subr.bf16.mxu0 0
        %599 = vmatpush1.bf16.msra.mxu0 0
        %600 = vmatprep.mubr.bf16.mxu0 0
        %601 = vmatmul.mubr.bf16.gmra.mrb[0].mxu0 %v512
        %v602 = vpop.f32.mrb[0].mxu0
        %v603 = vadd.f32 %v440, %v602
        %v604 = vpop.f32.mrb[0].mxu0
        %v605 = vpop.f32.mrb[0].mxu0
        %v606 = vadd.f32 %v445, %v605
        %v607 = vpop.f32.mrb[0].mxu0
        %608 = vmatprep.mubr.bf16.mxu0 0
        %609 = vmatmul.mubr.bf16.gmra.mrb[0].mxu0 %v515
        %v610 = vpop.f32.mrb[0].mxu0
        %v611 = vadd.f32 %v450, %v610
        %v612 = vpop.f32.mrb[0].mxu0
        %v613 = vpop.f32.mrb[0].mxu0
        %v614 = vadd.f32 %v455, %v613
        %v615 = vpop.f32.mrb[0].mxu0
        %616 = vdwg.mxu0
        %v617 = vmax.f32 %v552, 0.0
        %v618 = vmax.f32 %v554, 0.0
        %v619 = vmax.f32 %v603, 0.0
        %v620 = vmax.f32 %v556, 0.0
        %v621 = vmax.f32 %v558, 0.0
        %v622 = vmax.f32 %v606, 0.0
        %v623 = vlaneseq
        %v624 = vand.u32 %v623, 127
        %v625 = vadd.s32 %v624, 128
        %v626 = vadd.s32 %v624, 256
        %s627 = smul.u32 %s22, 256
        %s628 = ssub.s32 128, %s627
        %v629 = vstv %s628
        %vm630 = vcmp.ge.s32.totalorder %v624, %v629
        %vm631 = vcmp.ge.s32.totalorder %v625, %v629
        %vm632 = vcmp.ge.s32.totalorder %v626, %v629
        %v633 = vsel %vm630, 1, 0
        %v634 = vsel %vm631, 1, 0
        %v635 = vsel %vm632, 1, 0
        %vm636 = vcmp.eq.s32.totalorder %v633, 1
        %vm637 = vcmp.eq.s32.totalorder %v634, 1
        %vm638 = vcmp.eq.s32.totalorder %v635, 1
        %v639 = vsel %vm636, %v617, 0.0
        %v640 = vsel %vm637, %v618, 0.0
        %v641 = vsel %vm638, %v619, 0.0
        %v642 = vsel %vm636, %v620, 0.0
        %v643 = vsel %vm637, %v621, 0.0
        %v644 = vsel %vm638, %v622, 0.0
        %v645 = vpack.c.bf16 %v642, %v639
        %v646 = vpack.c.bf16 %v643, %v640
        %v647 = vpack.c.bf16 %v644, %v641
        %651 = vrot.lane.b32.xlu0 %v645, 126
        %v652 = vpop.permute.xlu0 %651
        %653 = vrot.lane.b32.xlu0 %v646, 126
        %v654 = vpop.permute.xlu0 %653
        %655 = vrot.lane.b32.xlu0 %v647, 126
        %v656 = vpop.permute.xlu0 %655
        %v657 = vsel %vm416, %v652, %v654
        %v658 = vsel %vm416, %v654, %v656
        %659 = vrot.lane.b32.xlu0 %v646, 124
        %v660 = vpop.permute.xlu0 %659
        %661 = vrot.lane.b32.xlu0 %v647, 124
        %v662 = vpop.permute.xlu0 %661
        %v663 = vsel %vm426, %v660, %v662
        %v664 = vld [vmem:[%s4] sm:$0xf]
        %v665 = vld [vmem:[%s4 + $0x4] sm:$0xf]
        %v666 = vld [vmem:[%s5] sm:$0xff]
        %v667 = vld [vmem:[%s5 + $0x8] sm:$0xff]
        %669 = vset.pattern.permute.xlu0 0
        %670 = vperm.xlu0 %669, %v666
        %v671 = vpop.permute.xlu0 %670
        %674 = vset.pattern.permute.xlu0 0
        %675 = vperm.xlu0 %674, %v667
        %v676 = vpop.permute.xlu0 %675
        %v680 = vunpack.c.l.b16 %v664
        %v681 = vunpack.c.l.b16 %v665
        %v682 = vpack.c.b16 %v681, %v680
        %683 = vrot.lane.b32.xlu0 %v645, 4
        %v684 = vpop.permute.xlu0 %683
        %685 = vrot.lane.b32.xlu0 %v646, 4
        %v686 = vpop.permute.xlu0 %685
        %687 = vrot.lane.b32.xlu0 %v647, 4
        %v688 = vpop.permute.xlu0 %687
        %689 = vrot.lane.b32.xlu0 %v657, 4
        %v690 = vpop.permute.xlu0 %689
        %691 = vrot.lane.b32.xlu0 %v658, 4
        %v692 = vpop.permute.xlu0 %691
        %693 = vrot.lane.b32.xlu0 %v656, 4
        %v694 = vpop.permute.xlu0 %693
        %695 = vrot.lane.b32.xlu0 %v660, 4
        %v696 = vpop.permute.xlu0 %695
        %697 = vrot.lane.b32.xlu0 %v663, 4
        %v698 = vpop.permute.xlu0 %697
        %699 = vrot.lane.b32.xlu0 %v662, 4
        %v700 = vpop.permute.xlu0 %699
        %v701 = vsel %vm491, %v684, %v686
        %v702 = vsel %vm491, %v686, %v688
        %v703 = vsel %vm491, %v690, %v692
        %v704 = vsel %vm491, %v692, %v694
        %v705 = vsel %vm491, %v696, %v698
        %v706 = vsel %vm491, %v698, %v700
        %v714 = vsel %vm510, %v682, 0
        %716 = vmatprep.subr.bf16.mxu0 %v702
        %717 = vmatpush1.bf16.msra.mxu0 %v701
        %718 = vmatprep.subr.bf16.mxu0 %v704
        %719 = vmatpush1.bf16.msra.mxu0 %v703
        %720 = vmatprep.subr.bf16.mxu0 %v706
        %721 = vmatpush1.bf16.msra.mxu0 %v705
        %722 = vmatprep.subr.bf16.mxu0 0
        %723 = vmatpush1.bf16.msra.mxu0 0
        %724 = vmatprep.subr.bf16.mxu0 0
        %725 = vmatpush1.bf16.msra.mxu0 0
        %726 = vmatprep.subr.bf16.mxu0 0
        %727 = vmatpush1.bf16.msra.mxu0 0
        %728 = vmatprep.subr.bf16.mxu0 0
        %729 = vmatpush1.bf16.msra.mxu0 0
        %730 = vmatprep.subr.bf16.mxu0 0
        %731 = vmatpush1.bf16.msra.mxu0 0
        %732 = vmatprep.subr.bf16.mxu0 0
        %733 = vmatpush1.bf16.msra.mxu0 0
        %734 = vmatprep.subr.bf16.mxu0 0
        %735 = vmatpush1.bf16.msra.mxu0 0
        %736 = vmatprep.subr.bf16.mxu0 0
        %737 = vmatpush1.bf16.msra.mxu0 0
        %738 = vmatprep.subr.bf16.mxu0 0
        %739 = vmatpush1.bf16.msra.mxu0 0
        %740 = vmatprep.subr.bf16.mxu0 0
        %741 = vmatpush1.bf16.msra.mxu0 0
        %742 = vmatprep.subr.bf16.mxu0 0
        %743 = vmatpush1.bf16.msra.mxu0 0
        %744 = vmatprep.subr.bf16.mxu0 0
        %745 = vmatpush1.bf16.msra.mxu0 0
        %746 = vmatprep.subr.bf16.mxu0 0
        %747 = vmatpush1.bf16.msra.mxu0 0
        %748 = vmatprep.mubr.bf16.mxu0 0
        %749 = vmatmul.mubr.bf16.gmra.mrb[0].mxu0 %v714
        %v750 = vpop.f32.mrb[0].mxu0
        %v751 = vadd.f32 %v671, %v750
        %v752 = vpop.f32.mrb[0].mxu0
        %v753 = vadd.f32 %v671, %v752
        %v754 = vpop.f32.mrb[0].mxu0
        %v755 = vadd.f32 %v676, %v754
        %v756 = vpop.f32.mrb[0].mxu0
        %v757 = vadd.f32 %v676, %v756
        %758 = vdwg.mxu0
        %v759 = vmax.f32 %v751, 0.0
        %v760 = vmax.f32 %v753, 0.0
        %v761 = vmax.f32 %v755, 0.0
        %v762 = vmax.f32 %v757, 0.0
        %v763 = vadd.f32 %v563, %v759
        %v764 = vadd.f32 %v611, %v760
        %v765 = vadd.f32 %v566, %v761
        %v766 = vadd.f32 %v614, %v762
        %v767 = vmax.f32 %v763, 0.0
        %v768 = vmax.f32 %v764, 0.0
        %v769 = vmax.f32 %v765, 0.0
        %v770 = vmax.f32 %v766, 0.0
        %771 = vst [vmem:[%s385] sm:$0xff] %v767
        %772 = vst [vmem:[%s385 + $0x8] sm:$0xff] %v768
        %773 = vst [vmem:[%s385 + $0x10] sm:$0xff] %v769
        %774 = vst [vmem:[%s385 + $0x18] sm:$0xff] %v770
        %s775 = smul.u32 2, %s22
        %p776 = scmp.lt.s32.totalorder %s21, 1
        %s777 = scalar_select %p776, %s21, 1
        %p778 = scmp.lt.s32.totalorder %s775, 1
        %s779 = scalar_select %p778, %s775, 1
        %s780 = smul.addr %s777, 4
        %s781 = sadd.s32 %s779, %s780
        %s782 = smul.addr %s781, 8
        %s783 = scalar_lea.vmem %s6, %s782
        // Predicated region
        $region121: #{temporal_block_forward.1} parent=111 // pred_check
          %p784 = pneg %p191
        $region122: #{temporal_block_forward.1} parent=111 // pred_check_branch
          %786 = sbr.rel (%p784) target = $region124
        $region123: #{temporal_block_forward.1} parent=111 // pred_region
          %s787 = smul.u32 2, %s22
        $region124: #{temporal_block_forward.1} parent=111 // pred_fallthru
          _
      $region112: #{temporal_block_forward.1} parent=5 // pred_fallthru
        _
      %p788 = scmp.le.s32.totalorder 2, %s12
      // Predicated region
      $region125: #{temporal_block_forward.1} parent=5 // pred_check
        %p789 = pneg %p788
      $region126: #{temporal_block_forward.1} parent=5 // pred_check_branch
        %791 = sbr.rel (%p789) target = $region128
      $region127: #{temporal_block_forward.1} parent=5 // pred_region
        %s792 = ssub.s32 %s12, 2
        // Predicated region
        $region129: #{temporal_block_forward.1} parent=127 // pred_check
          %p793 = pneg %p197
        $region130: #{temporal_block_forward.1} parent=127 // pred_check_branch
          %795 = sbr.rel (%p793) target = $region132
        $region131: #{temporal_block_forward.1} parent=127 // pred_region
          %s796 = smul.u32 2, %s24
          %p797 = scmp.lt.s32.totalorder %s23, 1
          %s798 = scalar_select %p797, %s23, 1
          %p799 = scmp.lt.s32.totalorder %s796, 1
          %s800 = scalar_select %p799, %s796, 1
          %s801 = smul.addr %s798, 4
          %s802 = sadd.s32 %s800, %s801
          %s803 = smul.addr %s802, 8
          %s804 = scalar_lea.vmem %s6, %s803
        $region132: #{temporal_block_forward.1} parent=127 // pred_fallthru
          _
      $region128: #{temporal_block_forward.1} parent=5 // pred_fallthru
        _
    $region6: #{temporal_block_forward.1} parent=1 // loop_footer
      %s16 = sadd.s32 1, %s12
    $region7: #{temporal_block_forward.1} parent=1 // loop_footer_branch
      %11 = sbr.rel target = $region3
    $region8: #{temporal_block_forward.1} parent=1 // loop_exit
      _

</llo_original>
